<compile_context>
chip_gen: v5e
topology: v5e:2x2
jax: 0.10.0
libtpu: 0.0.40
codegen_flags: <defaults>
</compile_context>

<pallas_src>
import functools

import jax
import jax.numpy as jnp
from jax.experimental import pallas as pl
from jax.experimental.pallas import tpu as pltpu

_LANE = 128
_MAX_RESIDENT_ROWS = 1024   # keep A_hat fully VMEM-resident up to this many padded nodes
_ROW_TILE = 512             # streamed A_hat row-strip height beyond that


def _round_up(v, m):
    return ((v + m - 1) // m) * m


def _vmem_limit_bytes():
    # Size the scoped VMEM limit per chip generation (v7x only has 64 MiB physical).
    try:
        cap = pltpu.get_tpu_info().vmem_capacity_bytes
        return int(cap * 3 // 4)
    except Exception:
        return 48 << 20


# ----------------------------- Pallas kernel --------------------------------
def _gconv_fused_kernel(x_ref, a_ref, w_ref, b_ref, o_ref, z_scr, h_scr):
    """grid = (layer, row_block); layer axis outermost/serial, rows inner/serial.

    x_ref : [N_pad, F_pad] f32   input features (resident, constant index map)
    a_ref : [tm,   N_pad] bf16   normalized-adjacency row strip for this block
    w_ref : [1, F_pad, F_pad] f32 weight of the current layer
    b_ref : [1, 1, F_pad]     f32 bias of the current layer
    o_ref : [tm, F_pad]       f32 output row strip (last layer's write survives)
    z_scr : [N_pad, F_pad] f32   current layer input Z, persists across layers
    h_scr : [N_pad, F_pad] bf16  H = Z @ W_l, computed once per layer
    """
    layer = pl.program_id(0)
    row = pl.program_id(1)
    tm = o_ref.shape[0]

    @pl.when(row == 0)
    def _layer_prologue():
        @pl.when(layer == 0)
        def _():
            z_scr[...] = x_ref[...]
        # Feature transform for the whole layer: H = Z @ W_l (bf16 MXU, f32 acc).
        h = jnp.dot(z_scr[...].astype(jnp.bfloat16),
                    w_ref[0].astype(jnp.bfloat16),
                    preferred_element_type=jnp.float32)
        h_scr[...] = h.astype(jnp.bfloat16)

    # Neighborhood aggregation for this row strip: Z_rows = relu(A_strip @ H + b).
    z_rows = jnp.dot(a_ref[...], h_scr[...], preferred_element_type=jnp.float32)
    z_rows = jnp.maximum(z_rows + b_ref[0], 0.0)

    o_ref[...] = z_rows.astype(o_ref.dtype)
    row0 = pl.multiple_of(row * tm, tm)
    z_scr[pl.ds(row0, tm), :] = z_rows      # becomes the next layer's input


def gconv_pallas(x_pad, a_hat_bf16, w_stack, b_stack, tm):
    """Fused forward of all GCN layers. Inputs are already padded / stacked."""
    n_pad, f_pad = x_pad.shape
    num_layers = w_stack.shape[0]
    row_blocks = n_pad // tm

    flops = 2 * num_layers * (n_pad * f_pad * f_pad + n_pad * n_pad * f_pad)
    bytes_accessed = (a_hat_bf16.size * 2 + x_pad.size * 4 + w_stack.size * 4
                      + b_stack.size * 4 + n_pad * f_pad * 4)

    grid_spec = pltpu.PrefetchScalarGridSpec(
        num_scalar_prefetch=0,
        grid=(num_layers, row_blocks),
        in_specs=[
            pl.BlockSpec((n_pad, f_pad), lambda l, i: (0, 0)),          # x (resident)
            pl.BlockSpec((tm, n_pad), lambda l, i: (i, 0)),             # A_hat row strip
            pl.BlockSpec((1, f_pad, f_pad), lambda l, i: (l, 0, 0)),    # W_l
            pl.BlockSpec((1, 1, f_pad), lambda l, i: (l, 0, 0)),        # b_l
        ],
        out_specs=pl.BlockSpec((tm, f_pad), lambda l, i: (i, 0)),
        scratch_shapes=[
            pltpu.VMEM((n_pad, f_pad), jnp.float32),    # Z (layer activations)
            pltpu.VMEM((n_pad, f_pad), jnp.bfloat16),   # H = Z @ W_l
        ],
    )
    return pl.pallas_call(
        _gconv_fused_kernel,
        out_shape=jax.ShapeDtypeStruct((n_pad, f_pad), jnp.float32),
        grid_spec=grid_spec,
        # Both axes are serial: the layer axis is a true dependence chain and the
        # row blocks share the per-core Z/H scratch.
        # TODO(synk): v7x megacore variant — split row strips across the 2 TCs with
        # per-core H and a core_barrier at the layer boundary.
        compiler_params=pltpu.CompilerParams(
            dimension_semantics=("arbitrary", "arbitrary"),
            vmem_limit_bytes=_vmem_limit_bytes()),
        cost_estimate=pl.CostEstimate(flops=flops, transcendentals=0,
                                      bytes_accessed=bytes_accessed),
    )(x_pad, a_hat_bf16, w_stack, b_stack)


# ----------------------------- plain-JAX glue --------------------------------
def build_norm_adj(edge_index, edge_weight, num_nodes):
    """Dense symmetrically-normalized adjacency with self-loops (PyG gcn_norm)."""
    src = edge_index[0]
    dst = edge_index[1]
    e = src.shape[0]
    if edge_weight is None:
        edge_weight = jnp.ones((e,), dtype=jnp.float32)
    loop = jnp.arange(num_nodes, dtype=src.dtype)
    src = jnp.concatenate([src, loop])
    dst = jnp.concatenate([dst, loop])
    w = jnp.concatenate([edge_weight, jnp.ones((num_nodes,), dtype=jnp.float32)])
    deg = jnp.zeros((num_nodes,), dtype=jnp.float32).at[dst].add(w)
    deg_inv_sqrt = jnp.where(deg > 0, jax.lax.rsqrt(deg), 0.0)
    norm = deg_inv_sqrt[src] * w * deg_inv_sqrt[dst]
    # out[dst] += norm * x[src]  ==>  A_hat[dst, src] = norm
    a_hat = jnp.zeros((num_nodes, num_nodes), dtype=jnp.float32).at[dst, src].add(norm)
    return a_hat
    # TODO(synk): for large sparse graphs, replace the dense A_hat matmul with a
    # CSR row-gather / segment-sum Pallas kernel (scalar-prefetched row pointers).


def init_gconv_params(key, input_dim, hidden_dim, num_layers):
    """Deterministic glorot-uniform weights, zero biases (matches GCNConv reset)."""
    params = []
    dims = [input_dim] + [hidden_dim] * num_layers
    for i in range(num_layers):
        key, sub = jax.random.split(key)
        fan_in, fan_out = dims[i], dims[i + 1]
        limit = jnp.sqrt(6.0 / (fan_in + fan_out))
        w = jax.random.uniform(sub, (fan_in, fan_out), jnp.float32, -limit, limit)
        b = jnp.zeros((fan_out,), jnp.float32)
        params.append((w, b))
    return params


@functools.partial(jax.jit, static_argnames=("num_nodes",))
def gconv_forward(x, edge_index, edge_weight, params, num_nodes):
    n = num_nodes
    f_dims = [x.shape[1]] + [w.shape[1] for (w, _) in params]
    f_pad = _round_up(max(f_dims), _LANE)            # lane-dense feature dim
    n_pad = max(16, _round_up(n, 16))
    if n_pad <= _MAX_RESIDENT_ROWS:
        tm = n_pad                                    # A_hat fully VMEM-resident
    else:
        n_pad = _round_up(n_pad, _ROW_TILE)
        tm = _ROW_TILE                                # streamed A_hat row strips

    a_hat = build_norm_adj(edge_index, edge_weight, n)
    a_pad = jnp.zeros((n_pad, n_pad), jnp.float32).at[:n, :n].set(a_hat)
    a_bf16 = a_pad.astype(jnp.bfloat16)               # halve the dominant HBM traffic

    x_pad = jnp.zeros((n_pad, f_pad), jnp.float32).at[:n, :x.shape[1]].set(x)

    num_layers = len(params)
    w_stack = jnp.zeros((num_layers, f_pad, f_pad), jnp.float32)
    b_stack = jnp.zeros((num_layers, 1, f_pad), jnp.float32)
    for l, (w, b) in enumerate(params):
        w_stack = w_stack.at[l, :w.shape[0], :w.shape[1]].set(w)
        b_stack = b_stack.at[l, 0, :b.shape[0]].set(b)

    out_pad = gconv_pallas(x_pad, a_bf16, w_stack, b_stack, tm)
    hidden = params[-1][0].shape[1]
    return out_pad[:n, :hidden]


def gconv_reference(x, edge_index, edge_weight, params, num_nodes):
    """Pure-JAX f32 reference for validation."""
    a_hat = build_norm_adj(edge_index, edge_weight, num_nodes)
    z = x
    for w, b in params:
        z = jnp.maximum(a_hat @ (z @ w) + b, 0.0)
    return z


# --------------------------------- demo --------------------------------------
if __name__ == "__main__":
    key = jax.random.PRNGKey(0)

    num_nodes = 16
    input_dim = 8
    hidden_dim = 32
    num_layers = 2
    num_edges = 40

    k_x, k_e, k_w, k_p = jax.random.split(key, 4)
    x = jax.random.normal(k_x, (num_nodes, input_dim), dtype=jnp.float32)
    edge_index = jax.random.randint(k_e, (2, num_edges), 0, num_nodes, dtype=jnp.int32)
    edge_weight = jax.random.uniform(k_w, (num_edges,), jnp.float32, 0.5, 1.5)

    params = init_gconv_params(k_p, input_dim, hidden_dim, num_layers)

    out = gconv_forward(x, edge_index, edge_weight, params, num_nodes)
    jax.block_until_ready(out)

    assert out.shape == (num_nodes, hidden_dim)
    assert bool(jnp.all(jnp.isfinite(out)))

    # Loose check vs the f32 reference (kernel uses bf16 MXU operands, f32 accum).
    ref = gconv_reference(x, edge_index, edge_weight, params, num_nodes)
    max_err = float(jnp.max(jnp.abs(out - ref)))
    scale = float(jnp.max(jnp.abs(ref)))
    assert max_err <= 5e-2 * (1.0 + scale), (max_err, scale)

    print("KERNEL_OK")
</pallas_src>

<mosaic_0001>
module attributes {stable_mosaic.version = 11 : i64} {
  func.func @_gconv_fused_kernel(%arg0: i32, %arg1: i32, %arg2: memref<16x128xf32, #tpu.memory_space<vmem>>, %arg3: memref<16x16xbf16, #tpu.memory_space<vmem>>, %arg4: memref<1x128x128xf32, #tpu.memory_space<vmem>>, %arg5: memref<1x1x128xf32, #tpu.memory_space<vmem>>, %arg6: memref<16x128xf32, #tpu.memory_space<vmem>>, %arg7: memref<16x128xf32, #tpu.memory_space<vmem>>, %arg8: memref<16x128xbf16, #tpu.memory_space<vmem>>) attributes {dimension_semantics = [#tpu.dimension_semantics<arbitrary>, #tpu.dimension_semantics<arbitrary>], iteration_bounds = array<i64: 2, 1>, scalar_prefetch = 0 : i64, scratch_operands = 2 : i64, tpu.core_type = #tpu.core_type<tc>, window_params = [{pipeline_mode = #tpu.pipeline_mode<synchronous>, transform_indices = @transform_0, window_bounds = array<i64: 16, 128>}, {transform_indices = @transform_1, window_bounds = array<i64: 16, 16>}, {transform_indices = @transform_2, window_bounds = array<i64: 1, 128, 128>}, {transform_indices = @transform_3, window_bounds = array<i64: 1, 1, 128>}, {transform_indices = @transform_4, window_bounds = array<i64: 16, 128>}]} {
    %c0_i32 = arith.constant 0 : i32
    %0 = arith.cmpi eq, %arg1, %c0_i32 : i32
    %1 = arith.extui %0 : i1 to i32
    %c0_i32_0 = arith.constant 0 : i32
    %2 = arith.cmpi ne, %1, %c0_i32_0 : i32
    scf.if %2 {
      %c0_i32_11 = arith.constant 0 : i32
      %17 = arith.cmpi eq, %arg0, %c0_i32_11 : i32
      %18 = arith.extui %17 : i1 to i32
      %c0_i32_12 = arith.constant 0 : i32
      %19 = arith.cmpi ne, %18, %c0_i32_12 : i32
      scf.if %19 {
        %c0_21 = arith.constant 0 : index
        %c0_22 = arith.constant 0 : index
        %28 = vector.load %arg2[%c0_21, %c0_22] : memref<16x128xf32, #tpu.memory_space<vmem>>, vector<16x128xf32>
        %c0_23 = arith.constant 0 : index
        %c0_24 = arith.constant 0 : index
        %29 = vector.load %arg7[%c0_23, %c0_24] : memref<16x128xf32, #tpu.memory_space<vmem>>, vector<16x128xf32>
        tpu.vector_store %arg7[%c0_23, %c0_24], %28 {strides = array<i32>} : memref<16x128xf32, #tpu.memory_space<vmem>>, vector<16x128xf32>,
      } else {
      }
      %c0_13 = arith.constant 0 : index
      %c0_14 = arith.constant 0 : index
      %20 = vector.load %arg7[%c0_13, %c0_14] : memref<16x128xf32, #tpu.memory_space<vmem>>, vector<16x128xf32>
      %21 = arith.truncf %20 : vector<16x128xf32> to vector<16x128xbf16>
      %c0_15 = arith.constant 0 : index
      %c0_16 = arith.constant 0 : index
      %c0_17 = arith.constant 0 : index
      %22 = vector.load %arg4[%c0_15, %c0_16, %c0_17] : memref<1x128x128xf32, #tpu.memory_space<vmem>>, vector<1x128x128xf32>
      %23 = vector.shape_cast %22 : vector<1x128x128xf32> to vector<128x128xf32>
      %24 = arith.truncf %23 : vector<128x128xf32> to vector<128x128xbf16>
      %cst_18 = arith.constant dense<0.000000e+00> : vector<16x128xf32>
      %25 = tpu.matmul %21, %24, %cst_18 {dimension_numbers = #tpu.dot_dimension_numbers<[1], [0], [0], [1], [0, 0, 1, 1], [], []>} : vector<16x128xbf16>, vector<128x128xbf16>, vector<16x128xf32> -> vector<16x128xf32>
      %26 = arith.truncf %25 : vector<16x128xf32> to vector<16x128xbf16>
      %c0_19 = arith.constant 0 : index
      %c0_20 = arith.constant 0 : index
      %27 = vector.load %arg8[%c0_19, %c0_20] : memref<16x128xbf16, #tpu.memory_space<vmem>>, vector<16x128xbf16>
      tpu.vector_store %arg8[%c0_19, %c0_20], %26 {strides = array<i32>} : memref<16x128xbf16, #tpu.memory_space<vmem>>, vector<16x128xbf16>,
    } else {
    }
    %c0 = arith.constant 0 : index
    %c0_1 = arith.constant 0 : index
    %3 = vector.load %arg3[%c0, %c0_1] : memref<16x16xbf16, #tpu.memory_space<vmem>>, vector<16x16xbf16>
    %c0_2 = arith.constant 0 : index
    %c0_3 = arith.constant 0 : index
    %4 = vector.load %arg8[%c0_2, %c0_3] : memref<16x128xbf16, #tpu.memory_space<vmem>>, vector<16x128xbf16>
    %cst = arith.constant dense<0.000000e+00> : vector<16x128xf32>
    %5 = tpu.matmul %3, %4, %cst {dimension_numbers = #tpu.dot_dimension_numbers<[1], [0], [0], [1], [0, 0, 1, 1], [], []>} : vector<16x16xbf16>, vector<16x128xbf16>, vector<16x128xf32> -> vector<16x128xf32>
    %c0_4 = arith.constant 0 : index
    %c0_5 = arith.constant 0 : index
    %c0_6 = arith.constant 0 : index
    %6 = vector.load %arg5[%c0_4, %c0_5, %c0_6] : memref<1x1x128xf32, #tpu.memory_space<vmem>>, vector<1x1x128xf32>
    %7 = vector.shape_cast %6 : vector<1x1x128xf32> to vector<1x128xf32>
    %8 = vector.broadcast %7 : vector<1x128xf32> to vector<16x128xf32>
    %9 = arith.addf %5, %8 : vector<16x128xf32>
    %cst_7 = arith.constant 0.000000e+00 : f32
    %10 = vector.broadcast %cst_7 : f32 to vector<16x128xf32>
    %11 = arith.maximumf %9, %10 : vector<16x128xf32>
    %c0_8 = arith.constant 0 : index
    %c0_9 = arith.constant 0 : index
    %12 = vector.load %arg6[%c0_8, %c0_9] : memref<16x128xf32, #tpu.memory_space<vmem>>, vector<16x128xf32>
    tpu.vector_store %arg6[%c0_8, %c0_9], %11 {strides = array<i32>} : memref<16x128xf32, #tpu.memory_space<vmem>>, vector<16x128xf32>,
    %c16_i32 = arith.constant 16 : i32
    %13 = arith.muli %arg1, %c16_i32 : i32
    %14 = tpu.assume_multiple %13, 16 : i32
    %15 = arith.index_cast %14 : i32 to index
    %c0_10 = arith.constant 0 : index
    %16 = vector.load %arg7[%15, %c0_10] : memref<16x128xf32, #tpu.memory_space<vmem>>, vector<16x128xf32>
    tpu.vector_store %arg7[%15, %c0_10], %11 {strides = array<i32>} : memref<16x128xf32, #tpu.memory_space<vmem>>, vector<16x128xf32>,
    return
  }
  func.func @transform_0(%arg0: i32, %arg1: i32) -> (i32, i32) {
    %c0_i32 = arith.constant 0 : i32
    %c0_i32_0 = arith.constant 0 : i32
    %c0_i32_1 = arith.constant 0 : i32
    return %c0_i32, %c0_i32_0 : i32, i32
  }
  func.func @transform_1(%arg0: i32, %arg1: i32) -> (i32, i32) {
    %c0_i32 = arith.constant 0 : i32
    %c0_i32_0 = arith.constant 0 : i32
    return %arg1, %c0_i32 : i32, i32
  }
  func.func @transform_2(%arg0: i32, %arg1: i32) -> (i32, i32, i32) {
    %c0_i32 = arith.constant 0 : i32
    %c0_i32_0 = arith.constant 0 : i32
    %c0_i32_1 = arith.constant 0 : i32
    return %arg0, %c0_i32, %c0_i32_0 : i32, i32, i32
  }
  func.func @transform_3(%arg0: i32, %arg1: i32) -> (i32, i32, i32) {
    %c0_i32 = arith.constant 0 : i32
    %c0_i32_0 = arith.constant 0 : i32
    %c0_i32_1 = arith.constant 0 : i32
    return %arg0, %c0_i32, %c0_i32_0 : i32, i32, i32
  }
  func.func @transform_4(%arg0: i32, %arg1: i32) -> (i32, i32) {
    %c0_i32 = arith.constant 0 : i32
    %c0_i32_0 = arith.constant 0 : i32
    return %arg1, %c0_i32 : i32, i32
  }
}

</mosaic_0001>

<llo_original>
// kernel: gconv_forward.1
$region0: #{gconv_forward.1}
  #allocation0 [shape = 'u32[]', space=smem, size = 0x4, offset = 0x4, fixed_abs, tag = 'smem constant byte address 0x4 - core index']
  #allocation1 [shape = 'u32[72,128]{1,0:T(1,128)}', space=vmem, size = 0x9000, scoped, tag = 'internal scratch']
  #allocation2 [shape = 'f32[16,128]{1,0:T(8,128)}', space=vmem, size = 0x2000, scoped, tag = 'scratch operand']
  #allocation3 [shape = 'bf16[16,128]{1,0:T(8,128)(2,1)}', space=vmem, size = 0x1000, scoped, tag = 'scratch operand']
  %s0 = inlined_call_operand.vmem [shape: f32[16,128], index: 0, kind: input, shape index: {}]
  %s1 = inlined_call_operand.vmem [shape: bf16[16,16], index: 1, kind: input, shape index: {}]
  %s2 = inlined_call_operand.vmem [shape: f32[2,128,128], index: 2, kind: input, shape index: {}]
  %s3 = inlined_call_operand.vmem [shape: f32[2,1,128], index: 3, kind: input, shape index: {}]
  %s4 = inlined_call_operand.hbm [shape: f32[16,128], index: 4, kind: output, shape index: {}]
  %s5 = sld [smem:[#allocation0]]
  $region57: #{gconv_forward.1} parent=0
    _
  %s7 = ssub.s32 1, %s5
  %s8 = scalar_select 0, %s7, %s5
  $region1: #{gconv_forward.1} parent=0
    #allocation4 [shape = 'u8[8192]{0}', space=vmem, size = 0x2000, scoped, tag = 'output window, operand 0, single buffered']
    #allocation5 [shape = 's32[2]{0}', space=sflag, size = 0x8, scoped, tag = 'scoped memory for gconv_forward.1']
    %9 = vsyncpa [#allocation5], 0
    loop: start=0, step=1, limit=4
    $region2: #{gconv_forward.1} parent=1 // loop_pre_header
      _
    $region3: #{gconv_forward.1} parent=1 // loop_header
      %s11 = sphi 0, %s15
      %p12 = scmp.ge.s32.totalorder %s11, 4
      %s18 = sphi 0, %s30
      %s19 = sphi 0, %s26
      %s20 = sphi 0, %s18
      %s21 = sphi 0, %s19
      %s22 = sphi 0, %s20
      %s23 = sphi 0, %s21
      %s31 = sphi 0, %s31
      %s33 = sphi 0, %s31
      %s34 = sphi 0, %s33
      %s48 = sphi 0, %s34
      %s54 = sphi 0, %s56
      %s57 = sphi 0, %s54
      %s58 = sphi 0, %s57
      %s74 = sphi 0, %s58
      %s80 = sphi 0, %s82
      %s83 = sphi 0, %s80
      %s84 = sphi 0, %s83
      %s100 = sphi 0, %s84
      %s106 = sphi 0, %s108
      %s109 = sphi 0, %s106
      %s110 = sphi 0, %s109
      %s126 = sphi 0, %s110
      %s132 = sphi 0, %s134
      %s135 = sphi 0, %s132
      %s136 = sphi 0, %s135
      %s152 = sphi 0, %s136
    $region4: #{gconv_forward.1} parent=1 // loop_header_branch
      %14 = sbr.rel (%p12) target = $region8
    $region5: #{gconv_forward.1} parent=1 // loop_body
      %s16 = ssub.s32 %s11, 1
      %s17 = ssub.s32 %s11, 2
      %s24 = sadd.s32 1, %s19
      %p25 = scmp.ge.s32.totalorder %s24, 1
      %s26 = scalar_select %p25, 0, %s24
      %s27 = sadd.s32 1, %s18
      %s28 = scalar_select %p25, %s27, %s18
      %p29 = scmp.ge.s32.totalorder %s28, 2
      %s30 = scalar_select %p29, 0, %s28
      %s32 = sadd.s32 %s31, 1
      %p35 = scmp.eq.s32.totalorder %s11, 1
      %p36 = scmp.ne.s32.totalorder %s31, %s33
      %p37 = scmp.eq.s32.totalorder %s11, 0
      %p38 = por %p36, %p37
      %p39 = scmp.ne.s32.totalorder %s31, %s33
      %p40 = scmp.eq.s32.totalorder %s16, 1
      %p41 = por %p39, %p40
      %p42 = scmp.ne.s32.totalorder %s33, %s34
      %p43 = scmp.eq.s32.totalorder %s16, 0
      %p44 = por %p42, %p43
      %p45 = scmp.ne.s32.totalorder %s33, %s34
      %p46 = scmp.eq.s32.totalorder %s17, 1
      %p47 = por %p45, %p46
      %p49 = scmp.ne.s32.totalorder %s34, %s48
      %p50 = scmp.eq.s32.totalorder %s17, 0
      %p51 = por %p49, %p50
      %s52 = ssub.s32 %s19, %s26
      %p53 = scmp.eq.s32.totalorder %s52, 0
      %s55 = sadd.s32 %s54, 1
      %s56 = scalar_select %p53, %s54, %s55
      %p59 = pneg %p53
      %p60 = scmp.eq.s32.totalorder %s11, 1
      %p61 = por %p59, %p60
      %p62 = scmp.ne.s32.totalorder %s54, %s57
      %p63 = scmp.eq.s32.totalorder %s11, 0
      %p64 = por %p62, %p63
      %p65 = scmp.ne.s32.totalorder %s54, %s57
      %p66 = scmp.eq.s32.totalorder %s16, 1
      %p67 = por %p65, %p66
      %p68 = scmp.ne.s32.totalorder %s57, %s58
      %p69 = scmp.eq.s32.totalorder %s16, 0
      %p70 = por %p68, %p69
      %p71 = scmp.ne.s32.totalorder %s57, %s58
      %p72 = scmp.eq.s32.totalorder %s17, 1
      %p73 = por %p71, %p72
      %p75 = scmp.ne.s32.totalorder %s58, %s74
      %p76 = scmp.eq.s32.totalorder %s17, 0
      %p77 = por %p75, %p76
      %s78 = ssub.s32 %s18, %s30
      %p79 = scmp.eq.s32.totalorder %s78, 0
      %s81 = sadd.s32 %s80, 1
      %s82 = scalar_select %p79, %s80, %s81
      %p85 = pneg %p79
      %p86 = scmp.eq.s32.totalorder %s11, 1
      %p87 = por %p85, %p86
      %p88 = scmp.ne.s32.totalorder %s80, %s83
      %p89 = scmp.eq.s32.totalorder %s11, 0
      %p90 = por %p88, %p89
      %p91 = scmp.ne.s32.totalorder %s80, %s83
      %p92 = scmp.eq.s32.totalorder %s16, 1
      %p93 = por %p91, %p92
      %p94 = scmp.ne.s32.totalorder %s83, %s84
      %p95 = scmp.eq.s32.totalorder %s16, 0
      %p96 = por %p94, %p95
      %p97 = scmp.ne.s32.totalorder %s83, %s84
      %p98 = scmp.eq.s32.totalorder %s17, 1
      %p99 = por %p97, %p98
      %p101 = scmp.ne.s32.totalorder %s84, %s100
      %p102 = scmp.eq.s32.totalorder %s17, 0
      %p103 = por %p101, %p102
      %s104 = ssub.s32 %s18, %s30
      %p105 = scmp.eq.s32.totalorder %s104, 0
      %s107 = sadd.s32 %s106, 1
      %s108 = scalar_select %p105, %s106, %s107
      %p111 = pneg %p105
      %p112 = scmp.eq.s32.totalorder %s11, 1
      %p113 = por %p111, %p112
      %p114 = scmp.ne.s32.totalorder %s106, %s109
      %p115 = scmp.eq.s32.totalorder %s11, 0
      %p116 = por %p114, %p115
      %p117 = scmp.ne.s32.totalorder %s106, %s109
      %p118 = scmp.eq.s32.totalorder %s16, 1
      %p119 = por %p117, %p118
      %p120 = scmp.ne.s32.totalorder %s109, %s110
      %p121 = scmp.eq.s32.totalorder %s16, 0
      %p122 = por %p120, %p121
      %p123 = scmp.ne.s32.totalorder %s109, %s110
      %p124 = scmp.eq.s32.totalorder %s17, 1
      %p125 = por %p123, %p124
      %p127 = scmp.ne.s32.totalorder %s110, %s126
      %p128 = scmp.eq.s32.totalorder %s17, 0
      %p129 = por %p127, %p128
      %s130 = ssub.s32 %s19, %s26
      %p131 = scmp.eq.s32.totalorder %s130, 0
      %s133 = sadd.s32 %s132, 1
      %s134 = scalar_select %p131, %s132, %s133
      %p137 = pneg %p131
      %p138 = scmp.eq.s32.totalorder %s11, 1
      %p139 = por %p137, %p138
      %p140 = scmp.ne.s32.totalorder %s132, %s135
      %p141 = scmp.eq.s32.totalorder %s11, 0
      %p142 = por %p140, %p141
      %p143 = scmp.ne.s32.totalorder %s132, %s135
      %p144 = scmp.eq.s32.totalorder %s16, 1
      %p145 = por %p143, %p144
      %p146 = scmp.ne.s32.totalorder %s135, %s136
      %p147 = scmp.eq.s32.totalorder %s16, 0
      %p148 = por %p146, %p147
      %p149 = scmp.ne.s32.totalorder %s135, %s136
      %p150 = scmp.eq.s32.totalorder %s17, 1
      %p151 = por %p149, %p150
      %p153 = scmp.ne.s32.totalorder %s136, %s152
      %p154 = scmp.eq.s32.totalorder %s17, 0
      %p155 = por %p153, %p154
      %p156 = scmp.le.s32.totalorder 1, %s11
      %p157 = scmp.lt.s32.totalorder %s11, 3
      %p158 = pnand %p156, %p157
      %p159 = pneg %p158
      // Predicated region
      $region9: #{gconv_forward.1} parent=5 // pred_check
        _
      $region10: #{gconv_forward.1} parent=5 // pred_check_branch
        %161 = sbr.rel (%p158) target = $region12
      $region11: #{gconv_forward.1} parent=5 // pred_region
        %s162 = ssub.s32 %s11, 1
        // Predicated region
        $region13: #{gconv_forward.1} parent=11 // pred_check
          %p163 = pneg %p44
        $region14: #{gconv_forward.1} parent=11 // pred_check_branch
          %165 = sbr.rel (%p163) target = $region16
        $region15: #{gconv_forward.1} parent=11 // pred_region
          _
        $region16: #{gconv_forward.1} parent=11 // pred_fallthru
          _
        // Predicated region
        $region17: #{gconv_forward.1} parent=11 // pred_check
          %p166 = pneg %p70
        $region18: #{gconv_forward.1} parent=11 // pred_check_branch
          %168 = sbr.rel (%p166) target = $region20
        $region19: #{gconv_forward.1} parent=11 // pred_region
          %s169 = smul.u32 2, %s21
          %p170 = scmp.lt.s32.totalorder %s169, 1
          %s171 = scalar_select %p170, %s169, 1
          %s172 = smul.addr %s171, 4
          %s173 = scalar_lea.vmem %s1, %s172
          %s174 = smul.u32 2, %s21
        $region20: #{gconv_forward.1} parent=11 // pred_fallthru
          _
      $region12: #{gconv_forward.1} parent=5 // pred_fallthru
        _
      %p175 = scmp.lt.s32.totalorder %s11, 2
      // Predicated region
      $region21: #{gconv_forward.1} parent=5 // pred_check
        %p176 = pneg %p175
      $region22: #{gconv_forward.1} parent=5 // pred_check_branch
        %178 = sbr.rel (%p176) target = $region24
      $region23: #{gconv_forward.1} parent=5 // pred_region
        // Predicated region
        $region25: #{gconv_forward.1} parent=23 // pred_check
          %p179 = pneg %p90
        $region26: #{gconv_forward.1} parent=23 // pred_check_branch
          %181 = sbr.rel (%p179) target = $region28
        $region27: #{gconv_forward.1} parent=23 // pred_region
          %p182 = scmp.lt.s32.totalorder %s18, 1
          %s183 = scalar_select %p182, %s18, 1
          %s184 = smul.addr %s183, 16
          %s185 = smul.addr %s184, 8
          %s186 = scalar_lea.vmem %s2, %s185
        $region28: #{gconv_forward.1} parent=23 // pred_fallthru
          _
        // Predicated region
        $region29: #{gconv_forward.1} parent=23 // pred_check
          %p187 = pneg %p116
        $region30: #{gconv_forward.1} parent=23 // pred_check_branch
          %189 = sbr.rel (%p187) target = $region32
        $region31: #{gconv_forward.1} parent=23 // pred_region
          %p190 = scmp.lt.s32.totalorder %s18, 1
          %s191 = scalar_select %p190, %s18, 1
          %s192 = scalar_lea.vmem %s3, %s191
        $region32: #{gconv_forward.1} parent=23 // pred_fallthru
          _
      $region24: #{gconv_forward.1} parent=5 // pred_fallthru
        _
      %p193 = scmp.le.s32.totalorder 1, %s11
      %p194 = scmp.lt.s32.totalorder %s11, 3
      %p195 = pnand %p193, %p194
      %p196 = pneg %p195
      // Predicated region
      $region33: #{gconv_forward.1} parent=5 // pred_check
        _
      $region34: #{gconv_forward.1} parent=5 // pred_check_branch
        %198 = sbr.rel (%p195) target = $region36
      $region35: #{gconv_forward.1} parent=5 // pred_region
        %s199 = ssub.s32 %s11, 1
        %p200 = pneg %p44
        %p201 = pneg %p41
        %s202 = smul.u32 2, %s21
        %p203 = scmp.lt.s32.totalorder %s202, 1
        %s204 = scalar_select %p203, %s202, 1
        %s205 = smul.addr %s204, 4
        %s206 = scalar_lea.vmem %s1, %s205
        %p207 = pneg %p70
        %p208 = pneg %p67
        %p209 = scmp.lt.s32.totalorder %s20, 1
        %s210 = scalar_select %p209, %s20, 1
        %s211 = smul.addr %s210, 16
        %s212 = smul.addr %s211, 8
        %s213 = scalar_lea.vmem %s2, %s212
        %p214 = pneg %p96
        %p215 = pneg %p93
        %p216 = scmp.lt.s32.totalorder %s20, 1
        %s217 = scalar_select %p216, %s20, 1
        %s218 = scalar_lea.vmem %s3, %s217
        %p219 = pneg %p122
        %p220 = pneg %p119
        %p221 = pneg %p148
        %p222 = pneg %p145
        %s223 = smul.u32 2, %s21
        %p224 = scmp.lt.s32.totalorder %s223, 1
        %s225 = scalar_select %p224, %s223, 1
        %s226 = smul.addr %s225, 4
        %s227 = scalar_lea.vmem %s1, %s226
        %s228 = smul.u32 2, %s21
        %p229 = scmp.lt.s32.totalorder %s20, 1
        %s230 = scalar_select %p229, %s20, 1
        %s231 = smul.addr %s230, 16
        %s232 = smul.addr %s231, 8
        %s233 = scalar_lea.vmem %s2, %s232
        %p234 = scmp.lt.s32.totalorder %s20, 1
        %s235 = scalar_select %p234, %s20, 1
        %s236 = scalar_lea.vmem %s3, %s235
        %s237 = smul.u32 2, %s21
        %p239 = scmp.eq.s32.totalorder %s21, 0
        // Predicated region
        $region37: #{gconv_forward.1} parent=35 // pred_check
          %p240 = pneg %p239
        $region38: #{gconv_forward.1} parent=35 // pred_check_branch
          %242 = sbr.rel (%p240) target = $region40
        $region39: #{gconv_forward.1} parent=35 // pred_region
          %p243 = scmp.eq.s32.totalorder %s20, 0
          // Predicated region
          $region41: #{gconv_forward.1} parent=39 // pred_check
            %p244 = pneg %p243
          $region42: #{gconv_forward.1} parent=39 // pred_check_branch
            %246 = sbr.rel (%p244) target = $region44
          $region43: #{gconv_forward.1} parent=39 // pred_region
            %v247 = vld [vmem:[%s0] sm:$0xff]
            %v248 = vld [vmem:[%s0 + $0x8] sm:$0xff]
            %249 = vst [vmem:[#allocation2] sm:$0xff] %v247
            %250 = vst [vmem:[#allocation2 + $0x8] sm:$0xff] %v248
          $region44: #{gconv_forward.1} parent=39 // pred_fallthru
            _
          %v251 = vld [vmem:[#allocation2] sm:$0xff]
          %v252 = vld [vmem:[#allocation2 + $0x8] sm:$0xff]
          %v253 = vpack.c.bf16 %v252, %v251
          %v254 = vld [vmem:[%s233] sm:$0xff]
          %v255 = vld [vmem:[%s233 + $0x8] sm:$0xff]
          %v256 = vld [vmem:[%s233 + $0x10] sm:$0xff]
          %v257 = vld [vmem:[%s233 + $0x18] sm:$0xff]
          %v258 = vld [vmem:[%s233 + $0x20] sm:$0xff]
          %v259 = vld [vmem:[%s233 + $0x28] sm:$0xff]
          %v260 = vld [vmem:[%s233 + $0x30] sm:$0xff]
          %v261 = vld [vmem:[%s233 + $0x38] sm:$0xff]
          %v262 = vld [vmem:[%s233 + $0x40] sm:$0xff]
          %v263 = vld [vmem:[%s233 + $0x48] sm:$0xff]
          %v264 = vld [vmem:[%s233 + $0x50] sm:$0xff]
          %v265 = vld [vmem:[%s233 + $0x58] sm:$0xff]
          %v266 = vld [vmem:[%s233 + $0x60] sm:$0xff]
          %v267 = vld [vmem:[%s233 + $0x68] sm:$0xff]
          %v268 = vld [vmem:[%s233 + $0x70] sm:$0xff]
          %v269 = vld [vmem:[%s233 + $0x78] sm:$0xff]
          %v270 = vpack.c.bf16 %v255, %v254
          %v271 = vpack.c.bf16 %v257, %v256
          %v272 = vpack.c.bf16 %v259, %v258
          %v273 = vpack.c.bf16 %v261, %v260
          %v274 = vpack.c.bf16 %v263, %v262
          %v275 = vpack.c.bf16 %v265, %v264
          %v276 = vpack.c.bf16 %v267, %v266
          %v277 = vpack.c.bf16 %v269, %v268
          %278 = vmatpush.bf16.msra.mxu0 %v277
          %279 = vmatpush.bf16.msra.mxu0 %v276
          %280 = vmatpush.bf16.msra.mxu0 %v275
          %281 = vmatpush.bf16.msra.mxu0 %v274
          %282 = vmatpush.bf16.msra.mxu0 %v273
          %283 = vmatpush.bf16.msra.mxu0 %v272
          %284 = vmatpush.bf16.msra.mxu0 %v271
          %285 = vmatpush.bf16.msra.mxu0 %v270
          %286 = vmatmul.bf16.gmra.mxu0 %v253
          %v287 = vpop.f32.mrf.mxu0
          %v288 = vadd.f32 0.0, %v287
          %v289 = vpop.f32.mrf.mxu0
          %v290 = vadd.f32 0.0, %v289
          %291 = vdwg.mxu0
          %v292 = vpack.c.bf16 %v288, %v288
          %v293 = vpack.c.bf16 %v290, %v290
          %294 = vst [vmem:[#allocation3] sm:$0xf] %v292
          %295 = vst [vmem:[#allocation3 + $0x4] sm:$0xf] %v293
        $region40: #{gconv_forward.1} parent=35 // pred_fallthru
          _
        %v296 = vld [vmem:[%s227] sm:$0xf]
        %v297 = vld [vmem:[%s227 + $0x4] sm:$0xf]
        %v298 = vld [vmem:[#allocation3] sm:$0xf]
        %v299 = vld [vmem:[#allocation3 + $0x4] sm:$0xf]
        %v300 = vld [vmem:[%s236] sm:$0x1]
        %v302 = vperm.slane %v300, 0
        %v306 = vunpack.c.l.b16 %v296
        %v307 = vunpack.c.l.b16 %v297
        %v308 = vpack.c.b16 %v307, %v306
        %v311 = vunpack.c.l.b16 %v298
        %v312 = vunpack.c.l.b16 %v299
        %v313 = vpack.c.b16 %v312, %v311
        %vm315 = vcmask 130048
        %v317 = vsel %vm315, %v308, 0
        %319 = vmatpush.bf16.msra.mxu0 0
        %320 = vmatpush.bf16.msra.mxu0 0
        %321 = vmatpush.bf16.msra.mxu0 0
        %322 = vmatpush.bf16.msra.mxu0 0
        %323 = vmatpush.bf16.msra.mxu0 0
        %324 = vmatpush.bf16.msra.mxu0 0
        %325 = vmatpush.bf16.msra.mxu0 0
        %326 = vmatpush.bf16.msra.mxu0 %v313
        %327 = vmatmul.bf16.gmra.mxu0 %v317
        %v328 = vpop.f32.mrf.mxu0
        %v329 = vadd.f32 %v302, %v328
        %v330 = vpop.f32.mrf.mxu0
        %v331 = vadd.f32 %v302, %v330
        %332 = vdwg.mxu0
        %v333 = vmax.f32 %v329, 0.0
        %v334 = vmax.f32 %v331, 0.0
        %335 = vst [vmem:[#allocation4] sm:$0xff] %v333
        %336 = vst [vmem:[#allocation4 + $0x8] sm:$0xff] %v334
        %s337 = smul.u32 %s21, 16
        %s338 = scalar_lea.vmem [#allocation2], %s337
        %339 = vst [vmem:[%s338] sm:$0xff] %v333
        %340 = vst [vmem:[%s338 + $0x8] sm:$0xff] %v334
        // Predicated region
        $region45: #{gconv_forward.1} parent=35 // pred_check
          %p341 = pneg %p145
        $region46: #{gconv_forward.1} parent=35 // pred_check_branch
          %343 = sbr.rel (%p341) target = $region48
        $region47: #{gconv_forward.1} parent=35 // pred_region
          %s344 = smul.u32 2, %s21
          %346 = vsyncadd [#allocation5], 0
          %s347 = smul.addr %s344, 8
          %s348 = scalar_lea.hbm %s4, %s347
          %s349 = sshll.u32 [#allocation4], 4
          %s350 = int_to_ptr.vmem [resolvable:$true] %s349
          %s351 = sshll.u32 %s348, 4
          %s352 = int_to_ptr.hbm [resolvable:$true] %s351
          %357 = dma.vmem_to_hbm [thread:$0]  %s350, 256, %s352, [#allocation5], 128, 128, 8
        $region48: #{gconv_forward.1} parent=35 // pred_fallthru
          _
        // Predicated region
        $region49: #{gconv_forward.1} parent=35 // pred_check
          %p358 = pneg %p145
        $region50: #{gconv_forward.1} parent=35 // pred_check_branch
          %360 = sbr.rel (%p358) target = $region52
        $region51: #{gconv_forward.1} parent=35 // pred_region
          %362 = dma.done [#allocation5], 256
        $region52: #{gconv_forward.1} parent=35 // pred_fallthru
          _
      $region36: #{gconv_forward.1} parent=5 // pred_fallthru
        _
      %p363 = scmp.le.s32.totalorder 2, %s11
      // Predicated region
      $region53: #{gconv_forward.1} parent=5 // pred_check
        %p364 = pneg %p363
      $region54: #{gconv_forward.1} parent=5 // pred_check_branch
        %366 = sbr.rel (%p364) target = $region56
      $region55: #{gconv_forward.1} parent=5 // pred_region
        %s367 = ssub.s32 %s11, 2
      $region56: #{gconv_forward.1} parent=5 // pred_fallthru
        _
    $region6: #{gconv_forward.1} parent=1 // loop_footer
      %s15 = sadd.s32 1, %s11
    $region7: #{gconv_forward.1} parent=1 // loop_footer_branch
      %10 = sbr.rel target = $region3
    $region8: #{gconv_forward.1} parent=1 // loop_exit
      _
    %368 = vsyncpa [#allocation5], 1
    %s369 = scalar_lea.sflag [#allocation5], 1
    %370 = vsyncpa %s369, 1

</llo_original>
